<compile_context>
chip_gen: v7x
topology: tpu7x:2x2x1
jax: 0.10.0
libtpu: 0.0.40
codegen_flags: <defaults>
</compile_context>

<pallas_src>
import functools
import math

import jax
import jax.numpy as jnp
from jax.experimental import pallas as pl
from jax.experimental.pallas import tpu as pltpu


def _round_up(x, m):
    return ((x + m - 1) // m) * m


def _block_diag(w, pack):
    """(din, dout) -> (pack*din, pack*dout) block-diagonal replication of w."""
    if pack == 1:
        return w
    din, dout = w.shape
    eye = jnp.eye(pack, dtype=w.dtype)
    return jnp.einsum("pq,ij->piqj", eye, w).reshape(pack * din, pack * dout)


def _tile_vec(v, pack):
    """(d,) -> (1, pack*d): concatenated copies, one per packed segment."""
    return jnp.tile(v.reshape(-1), pack).reshape(1, -1)


def _make_ff_kernel(pre_norm: bool, act: str, eps: float, inv_d: float):
    def kernel(x_ref, seg_ref, w1_ref, b1_ref, w2_ref, b2_ref,
               g_ref, beta_ref, o_ref):
        x = x_ref[...].astype(jnp.float32)      # (TM, Dp) packed rows
        seg = seg_ref[...]                      # (Dp, Dp) f32 segment-sum matrix
        gamma = g_ref[...]                      # (1, Dp)  (tiled)
        beta = beta_ref[...]                    # (1, Dp)  (tiled)

        def layer_norm(v):
            # Segmented (per logical row) LayerNorm.  The per-32-lane-group
            # sums go through the MXU via the block-diagonal ones matrix, so
            # no narrow cross-lane XLU reductions are needed.
            mean = jnp.dot(v, seg, preferred_element_type=jnp.float32) * inv_d
            cen = v - mean
            var = jnp.dot(cen * cen, seg,
                          preferred_element_type=jnp.float32) * inv_d
            return cen * jax.lax.rsqrt(var + eps) * gamma + beta

        if pre_norm:
            # NOTE: matches the PyTorch module exactly — `x = self.layer_norm(x)`
            # reassigns x, so the residual below adds the *normalized* input.
            x = layer_norm(x)

        h = jnp.dot(x, w1_ref[...],
                    preferred_element_type=jnp.float32) + b1_ref[...]
        if act == "swish":
            h = h * jax.nn.sigmoid(h)
        elif act == "relu":
            h = jnp.maximum(h, 0.0)
        elif act == "gelu":
            # TODO(synk): exact-erf gelu depends on a Mosaic erf lowering; the
            # default config uses 'swish' so this branch is never traced here.
            h = h * 0.5 * (1.0 + jax.lax.erf(h / math.sqrt(2.0)))
        else:
            raise ValueError(f"unknown activation: {act}")

        out = jnp.dot(h, w2_ref[...],
                      preferred_element_type=jnp.float32) + b2_ref[...]
        out = out + x
        if not pre_norm:
            out = layer_norm(out)

        o_ref[...] = out.astype(o_ref.dtype)

    return kernel


def feedforward_pallas(x, params, *, pre_norm=True, act="swish",
                       eps=1e-5, row_tile=1024):
    """x: (..., model_dim). params: w1 (D,H), b1 (H,), w2 (H,D), b2 (D,),
    gamma (D,), beta (D,)."""
    orig_shape = x.shape
    D = orig_shape[-1]
    H = params["w1"].shape[1]
    x2 = x.reshape(-1, D)
    N = x2.shape[0]

    # Lane packing: fold PACK consecutive logical rows into one 128-lane row.
    PACK = 128 // D if (D < 128 and 128 % D == 0) else 1
    Dp, Hp = D * PACK, H * PACK

    # Row tiling (in packed rows): big tiles to amortize per-step overhead,
    # capped (to an 8-sublane multiple) so tiny inputs are not over-padded.
    packed_rows = -(-N // PACK)
    tm = max(8, _round_up(min(row_tile // PACK, _round_up(packed_rows, 8)), 8))
    grid = -(-packed_rows // tm)
    n_pad = grid * tm * PACK

    if n_pad != N:
        x2 = jnp.pad(x2, ((0, n_pad - N), (0, 0)))
    xp = x2.reshape(n_pad // PACK, Dp)                       # lane-dense slab

    w1 = _block_diag(params["w1"], PACK)                     # (Dp, Hp)
    w2 = _block_diag(params["w2"], PACK)                     # (Hp, Dp)
    b1 = _tile_vec(params["b1"], PACK)                       # (1, Hp)
    b2 = _tile_vec(params["b2"], PACK)                       # (1, Dp)
    gamma = _tile_vec(params["gamma"], PACK)                 # (1, Dp)
    beta = _tile_vec(params["beta"], PACK)                   # (1, Dp)
    seg = _block_diag(jnp.ones((D, D), jnp.float32), PACK)   # (Dp, Dp)

    kernel = _make_ff_kernel(pre_norm, act, eps, 1.0 / D)

    itemsize = jnp.dtype(x.dtype).itemsize
    wbytes = (w1.size + w2.size + seg.size + b1.size + b2.size
              + gamma.size + beta.size) * 4
    cost = pl.CostEstimate(
        flops=int(4 * n_pad * D * H + 4 * n_pad * D * Dp),
        transcendentals=int(n_pad * H),
        bytes_accessed=int(2 * n_pad * D * itemsize + wbytes),
    )

    out_p = pl.pallas_call(
        kernel,
        out_shape=jax.ShapeDtypeStruct(xp.shape, x.dtype),
        grid_spec=pltpu.PrefetchScalarGridSpec(
            num_scalar_prefetch=0,
            grid=(grid,),
            in_specs=[
                pl.BlockSpec((tm, Dp), lambda i: (i, 0)),   # packed x tile
                pl.BlockSpec((Dp, Dp), lambda i: (0, 0)),   # segment-sum matrix
                pl.BlockSpec((Dp, Hp), lambda i: (0, 0)),   # block-diag w1
                pl.BlockSpec((1, Hp), lambda i: (0, 0)),    # b1 (tiled)
                pl.BlockSpec((Hp, Dp), lambda i: (0, 0)),   # block-diag w2
                pl.BlockSpec((1, Dp), lambda i: (0, 0)),    # b2 (tiled)
                pl.BlockSpec((1, Dp), lambda i: (0, 0)),    # gamma (tiled)
                pl.BlockSpec((1, Dp), lambda i: (0, 0)),    # beta (tiled)
            ],
            out_specs=pl.BlockSpec((tm, Dp), lambda i: (i, 0)),
        ),
        compiler_params=pltpu.CompilerParams(
            dimension_semantics=("parallel",)),
        cost_estimate=cost,
    )(xp, seg, w1, b1, w2, b2, gamma, beta)

    out2 = out_p.reshape(n_pad, D)[:N]
    return out2.reshape(orig_shape)


def feedforward_ref(x, params, *, pre_norm=True, act="swish", eps=1e-5):
    """Pure-JAX reference with identical semantics (for verification)."""
    def layer_norm(v):
        mean = jnp.mean(v, axis=-1, keepdims=True)
        var = jnp.mean(jnp.square(v - mean), axis=-1, keepdims=True)
        return (v - mean) / jnp.sqrt(var + eps) * params["gamma"] + params["beta"]

    if pre_norm:
        x = layer_norm(x)
    h = x @ params["w1"] + params["b1"]
    if act == "swish":
        h = h * jax.nn.sigmoid(h)
    elif act == "relu":
        h = jnp.maximum(h, 0.0)
    else:
        h = h * 0.5 * (1.0 + jax.lax.erf(h / math.sqrt(2.0)))
    out = h @ params["w2"] + params["b2"] + x
    if not pre_norm:
        out = layer_norm(out)
    return out


def init_params(key, model_dim, ff_dim, dtype=jnp.float32):
    """Deterministic init mimicking nn.Linear defaults (uniform +-1/sqrt(fan_in))."""
    k1, k2, k3, k4 = jax.random.split(key, 4)
    lim1 = 1.0 / jnp.sqrt(model_dim)
    lim2 = 1.0 / jnp.sqrt(ff_dim)
    return {
        # stored as (in, out) = transpose of PyTorch's (out, in) weight
        "w1": jax.random.uniform(k1, (model_dim, ff_dim), dtype, -lim1, lim1),
        "b1": jax.random.uniform(k2, (ff_dim,), dtype, -lim1, lim1),
        "w2": jax.random.uniform(k3, (ff_dim, model_dim), dtype, -lim2, lim2),
        "b2": jax.random.uniform(k4, (model_dim,), dtype, -lim2, lim2),
        "gamma": jnp.ones((model_dim,), dtype),
        "beta": jnp.zeros((model_dim,), dtype),
    }


if __name__ == "__main__":
    # config = {'model_dim': 32, 'ff_dim': 64, 'ff_activation': 'swish',
    #           'pre_norm': True}
    model_dim, ff_dim = 32, 64
    batch, seq = 2, 8

    key = jax.random.PRNGKey(0)
    kx, kp = jax.random.split(key)
    x = jax.random.normal(kx, (batch, seq, model_dim), jnp.float32)
    params = init_params(kp, model_dim, ff_dim)

    run = functools.partial(feedforward_pallas, pre_norm=True, act="swish")
    out = jax.block_until_ready(run(x, params))
    ref = feedforward_ref(x, params, pre_norm=True, act="swish")
    assert out.shape == x.shape and out.dtype == x.dtype
    assert jnp.allclose(out, ref, atol=2e-5, rtol=2e-5), "pre_norm mismatch"

    # Also exercise the post-norm (trailing LayerNorm) path.
    out_pn = jax.block_until_ready(
        feedforward_pallas(x, params, pre_norm=False, act="swish"))
    ref_pn = feedforward_ref(x, params, pre_norm=False, act="swish")
    assert jnp.allclose(out_pn, ref_pn, atol=2e-5, rtol=2e-5), "post_norm mismatch"

    print("KERNEL_OK")
</pallas_src>

<mosaic_0001>
module attributes {stable_mosaic.version = 11 : i64} {
  func.func @kernel(%arg0: i32, %arg1: memref<8x128xf32, #tpu.memory_space<vmem>>, %arg2: memref<128x128xf32, #tpu.memory_space<vmem>>, %arg3: memref<128x256xf32, #tpu.memory_space<vmem>>, %arg4: memref<1x256xf32, #tpu.memory_space<vmem>>, %arg5: memref<256x128xf32, #tpu.memory_space<vmem>>, %arg6: memref<1x128xf32, #tpu.memory_space<vmem>>, %arg7: memref<1x128xf32, #tpu.memory_space<vmem>>, %arg8: memref<1x128xf32, #tpu.memory_space<vmem>>, %arg9: memref<8x128xf32, #tpu.memory_space<vmem>>) attributes {dimension_semantics = [#tpu.dimension_semantics<parallel>], iteration_bounds = array<i64: 1>, scalar_prefetch = 0 : i64, scratch_operands = 0 : i64, tpu.core_type = #tpu.core_type<tc>, window_params = [{transform_indices = @transform_0, window_bounds = array<i64: 8, 128>}, {pipeline_mode = #tpu.pipeline_mode<synchronous>, transform_indices = @transform_1, window_bounds = array<i64: 128, 128>}, {pipeline_mode = #tpu.pipeline_mode<synchronous>, transform_indices = @transform_2, window_bounds = array<i64: 128, 256>}, {pipeline_mode = #tpu.pipeline_mode<synchronous>, transform_indices = @transform_3, window_bounds = array<i64: 1, 256>}, {pipeline_mode = #tpu.pipeline_mode<synchronous>, transform_indices = @transform_4, window_bounds = array<i64: 256, 128>}, {pipeline_mode = #tpu.pipeline_mode<synchronous>, transform_indices = @transform_5, window_bounds = array<i64: 1, 128>}, {pipeline_mode = #tpu.pipeline_mode<synchronous>, transform_indices = @transform_6, window_bounds = array<i64: 1, 128>}, {pipeline_mode = #tpu.pipeline_mode<synchronous>, transform_indices = @transform_7, window_bounds = array<i64: 1, 128>}, {transform_indices = @transform_8, window_bounds = array<i64: 8, 128>}]} {
    %c0 = arith.constant 0 : index
    %c0_0 = arith.constant 0 : index
    %0 = vector.load %arg1[%c0, %c0_0] : memref<8x128xf32, #tpu.memory_space<vmem>>, vector<8x128xf32>
    %c0_1 = arith.constant 0 : index
    %c0_2 = arith.constant 0 : index
    %1 = vector.load %arg2[%c0_1, %c0_2] : memref<128x128xf32, #tpu.memory_space<vmem>>, vector<128x128xf32>
    %c0_3 = arith.constant 0 : index
    %c0_4 = arith.constant 0 : index
    %2 = vector.load %arg7[%c0_3, %c0_4] : memref<1x128xf32, #tpu.memory_space<vmem>>, vector<1x128xf32>
    %c0_5 = arith.constant 0 : index
    %c0_6 = arith.constant 0 : index
    %3 = vector.load %arg8[%c0_5, %c0_6] : memref<1x128xf32, #tpu.memory_space<vmem>>, vector<1x128xf32>
    %cst = arith.constant dense<0.000000e+00> : vector<8x128xf32>
    %4 = tpu.matmul %0, %1, %cst {dimension_numbers = #tpu.dot_dimension_numbers<[1], [0], [0], [1], [0, 0, 1, 1], [], []>} : vector<8x128xf32>, vector<128x128xf32>, vector<8x128xf32> -> vector<8x128xf32>
    %cst_7 = arith.constant 3.125000e-02 : f32
    %5 = vector.broadcast %cst_7 : f32 to vector<8x128xf32>
    %6 = arith.mulf %4, %5 : vector<8x128xf32>
    %7 = arith.subf %0, %6 : vector<8x128xf32>
    %8 = arith.mulf %7, %7 : vector<8x128xf32>
    %cst_8 = arith.constant dense<0.000000e+00> : vector<8x128xf32>
    %9 = tpu.matmul %8, %1, %cst_8 {dimension_numbers = #tpu.dot_dimension_numbers<[1], [0], [0], [1], [0, 0, 1, 1], [], []>} : vector<8x128xf32>, vector<128x128xf32>, vector<8x128xf32> -> vector<8x128xf32>
    %cst_9 = arith.constant 3.125000e-02 : f32
    %10 = vector.broadcast %cst_9 : f32 to vector<8x128xf32>
    %11 = arith.mulf %9, %10 : vector<8x128xf32>
    %cst_10 = arith.constant 9.99999974E-6 : f32
    %12 = vector.broadcast %cst_10 : f32 to vector<8x128xf32>
    %13 = arith.addf %11, %12 : vector<8x128xf32>
    %14 = math.rsqrt %13 : vector<8x128xf32>
    %15 = arith.mulf %7, %14 : vector<8x128xf32>
    %16 = vector.broadcast %2 : vector<1x128xf32> to vector<8x128xf32>
    %17 = arith.mulf %15, %16 : vector<8x128xf32>
    %18 = vector.broadcast %3 : vector<1x128xf32> to vector<8x128xf32>
    %19 = arith.addf %17, %18 : vector<8x128xf32>
    %c0_11 = arith.constant 0 : index
    %c0_12 = arith.constant 0 : index
    %20 = vector.load %arg3[%c0_11, %c0_12] : memref<128x256xf32, #tpu.memory_space<vmem>>, vector<128x256xf32>
    %cst_13 = arith.constant dense<0.000000e+00> : vector<8x256xf32>
    %21 = tpu.matmul %19, %20, %cst_13 {dimension_numbers = #tpu.dot_dimension_numbers<[1], [0], [0], [1], [0, 0, 1, 1], [], []>} : vector<8x128xf32>, vector<128x256xf32>, vector<8x256xf32> -> vector<8x256xf32>
    %c0_14 = arith.constant 0 : index
    %c0_15 = arith.constant 0 : index
    %22 = vector.load %arg4[%c0_14, %c0_15] : memref<1x256xf32, #tpu.memory_space<vmem>>, vector<1x256xf32>
    %23 = vector.broadcast %22 : vector<1x256xf32> to vector<8x256xf32>
    %24 = arith.addf %21, %23 : vector<8x256xf32>
    %25 = arith.negf %24 : vector<8x256xf32>
    %26 = math.exp %25 : vector<8x256xf32>
    %cst_16 = arith.constant 1.000000e+00 : f32
    %27 = vector.broadcast %cst_16 : f32 to vector<8x256xf32>
    %28 = arith.addf %27, %26 : vector<8x256xf32>
    %29 = arith.divf %27, %28 : vector<8x256xf32>
    %30 = arith.mulf %24, %29 : vector<8x256xf32>
    %c0_17 = arith.constant 0 : index
    %c0_18 = arith.constant 0 : index
    %31 = vector.load %arg5[%c0_17, %c0_18] : memref<256x128xf32, #tpu.memory_space<vmem>>, vector<256x128xf32>
    %cst_19 = arith.constant dense<0.000000e+00> : vector<8x128xf32>
    %32 = tpu.matmul %30, %31, %cst_19 {dimension_numbers = #tpu.dot_dimension_numbers<[1], [0], [0], [1], [0, 0, 1, 1], [], []>} : vector<8x256xf32>, vector<256x128xf32>, vector<8x128xf32> -> vector<8x128xf32>
    %c0_20 = arith.constant 0 : index
    %c0_21 = arith.constant 0 : index
    %33 = vector.load %arg6[%c0_20, %c0_21] : memref<1x128xf32, #tpu.memory_space<vmem>>, vector<1x128xf32>
    %34 = vector.broadcast %33 : vector<1x128xf32> to vector<8x128xf32>
    %35 = arith.addf %32, %34 : vector<8x128xf32>
    %36 = arith.addf %35, %19 : vector<8x128xf32>
    %c0_22 = arith.constant 0 : index
    %c0_23 = arith.constant 0 : index
    %37 = vector.load %arg9[%c0_22, %c0_23] : memref<8x128xf32, #tpu.memory_space<vmem>>, vector<8x128xf32>
    tpu.vector_store %arg9[%c0_22, %c0_23], %36 {strides = array<i32>} : memref<8x128xf32, #tpu.memory_space<vmem>>, vector<8x128xf32>,
    return
  }
  func.func @transform_0(%arg0: i32) -> (i32, i32) {
    %c0_i32 = arith.constant 0 : i32
    %c0_i32_0 = arith.constant 0 : i32
    return %arg0, %c0_i32 : i32, i32
  }
  func.func @transform_1(%arg0: i32) -> (i32, i32) {
    %c0_i32 = arith.constant 0 : i32
    %c0_i32_0 = arith.constant 0 : i32
    %c0_i32_1 = arith.constant 0 : i32
    return %c0_i32, %c0_i32_0 : i32, i32
  }
  func.func @transform_2(%arg0: i32) -> (i32, i32) {
    %c0_i32 = arith.constant 0 : i32
    %c0_i32_0 = arith.constant 0 : i32
    %c0_i32_1 = arith.constant 0 : i32
    return %c0_i32, %c0_i32_0 : i32, i32
  }
  func.func @transform_3(%arg0: i32) -> (i32, i32) {
    %c0_i32 = arith.constant 0 : i32
    %c0_i32_0 = arith.constant 0 : i32
    %c0_i32_1 = arith.constant 0 : i32
    return %c0_i32, %c0_i32_0 : i32, i32
  }
  func.func @transform_4(%arg0: i32) -> (i32, i32) {
    %c0_i32 = arith.constant 0 : i32
    %c0_i32_0 = arith.constant 0 : i32
    %c0_i32_1 = arith.constant 0 : i32
    return %c0_i32, %c0_i32_0 : i32, i32
  }
  func.func @transform_5(%arg0: i32) -> (i32, i32) {
    %c0_i32 = arith.constant 0 : i32
    %c0_i32_0 = arith.constant 0 : i32
    %c0_i32_1 = arith.constant 0 : i32
    return %c0_i32, %c0_i32_0 : i32, i32
  }
  func.func @transform_6(%arg0: i32) -> (i32, i32) {
    %c0_i32 = arith.constant 0 : i32
    %c0_i32_0 = arith.constant 0 : i32
    %c0_i32_1 = arith.constant 0 : i32
    return %c0_i32, %c0_i32_0 : i32, i32
  }
  func.func @transform_7(%arg0: i32) -> (i32, i32) {
    %c0_i32 = arith.constant 0 : i32
    %c0_i32_0 = arith.constant 0 : i32
    %c0_i32_1 = arith.constant 0 : i32
    return %c0_i32, %c0_i32_0 : i32, i32
  }
  func.func @transform_8(%arg0: i32) -> (i32, i32) {
    %c0_i32 = arith.constant 0 : i32
    %c0_i32_0 = arith.constant 0 : i32
    return %arg0, %c0_i32 : i32, i32
  }
}

</mosaic_0001>

<llo_original>
// kernel: tpu_custom_call.1
$region0: #{tpu_custom_call.1}
  #allocation0 [shape = 'u32[]', space=smem, size = 0x4, offset = 0x4, fixed_abs, tag = 'smem constant byte address 0x4 - core index']
  #allocation1 [shape = 'u32[144,128]{1,0:T(1,128)}', space=vmem, size = 0x12000, scoped, tag = 'internal scratch']
  %s0 = inlined_call_operand.hbm [shape: f32[8,128], index: 0, kind: input, shape index: {}]
  %s1 = inlined_call_operand.hbm [shape: f32[128,128], index: 1, kind: input, shape index: {}]
  %s2 = inlined_call_operand.hbm [shape: f32[128,256], index: 2, kind: input, shape index: {}]
  %s3 = inlined_call_operand.vmem [shape: f32[1,256], index: 3, kind: input, shape index: {}]
  %s4 = inlined_call_operand.hbm [shape: f32[256,128], index: 4, kind: input, shape index: {}]
  %s5 = inlined_call_operand.vmem [shape: f32[1,128], index: 5, kind: input, shape index: {}]
  %s6 = inlined_call_operand.vmem [shape: f32[1,128], index: 6, kind: input, shape index: {}]
  %s7 = inlined_call_operand.vmem [shape: f32[1,128], index: 7, kind: input, shape index: {}]
  %s8 = inlined_call_operand.hbm [shape: f32[8,128], index: 8, kind: output, shape index: {}]
  %s9 = sld [smem:[#allocation0]]
  $region58: #{tpu_custom_call.1} parent=0
    _
  %s11 = ssub.s32 1, %s9
  %s12 = scalar_select 0, %s11, %s9
  $region1: #{tpu_custom_call.1} parent=0
    #allocation2 [shape = 'u8[4096]{0}', space=vmem, size = 0x1000, scoped, tag = 'input window, operand 0, single buffered']
    #allocation3 [shape = 's32[1]{0}', space=sflag, size = 0x4, scoped, tag = 'scoped memory for tpu_custom_call.1']
    #allocation4 [shape = 's32[1]{0}', space=sflag, size = 0x4, scoped, tag = 'scoped memory for tpu_custom_call.1']
    #allocation5 [shape = 'u8[65536]{0}', space=vmem, size = 0x10000, scoped, tag = 'input window, operand 1, single buffered']
    #allocation6 [shape = 's32[1]{0}', space=sflag, size = 0x4, scoped, tag = 'scoped memory for tpu_custom_call.1']
    #allocation7 [shape = 'u8[131072]{0}', space=vmem, size = 0x20000, scoped, tag = 'input window, operand 2, single buffered']
    #allocation8 [shape = 'u8[131072]{0}', space=vmem, size = 0x20000, scoped, tag = 'input window, operand 4, single buffered']
    #allocation9 [shape = 's32[1]{0}', space=sflag, size = 0x4, scoped, tag = 'scoped memory for tpu_custom_call.1']
    #allocation10 [shape = 'u8[4096]{0}', space=vmem, size = 0x1000, scoped, tag = 'output window, operand 0, single buffered']
    %13 = vsyncpa [#allocation3], 0
    %14 = vsyncpa [#allocation6], 0
    %15 = vsyncpa [#allocation9], 0
    %16 = vsyncpa [#allocation4], 0
    // Predicated region
    $region2: #{tpu_custom_call.1} parent=1 // pred_check
      _
    $region3: #{tpu_custom_call.1} parent=1 // pred_check_branch
      %18 = sbr.rel (0) target = $region5
    $region4: #{tpu_custom_call.1} parent=1 // pred_region
      %s20 = ssub.s32 128, 128
      %21 = vsyncadd [#allocation3], %s20
      %s23 = sshll.u32 [#allocation2], 4
      %s24 = int_to_ptr.vmem [resolvable:$true] %s23
      %26 = dma.hbm_to_vmem [thread:$0]  %s0, 128, %s24, [#allocation3]
    $region5: #{tpu_custom_call.1} parent=1 // pred_fallthru
      _
    // Predicated region
    $region6: #{tpu_custom_call.1} parent=1 // pred_check
      _
    $region7: #{tpu_custom_call.1} parent=1 // pred_check_branch
      %28 = sbr.rel (0) target = $region9
    $region8: #{tpu_custom_call.1} parent=1 // pred_region
      %s30 = ssub.s32 2048, 2048
      %31 = vsyncadd [#allocation6], %s30
      %s32 = sshll.u32 [#allocation5], 4
      %s33 = int_to_ptr.vmem [resolvable:$true] %s32
      %38 = dma.hbm_to_vmem [thread:$0]  %s1, 2048, %s33, [#allocation6], 128, 128, 8
    $region9: #{tpu_custom_call.1} parent=1 // pred_fallthru
      _
    // Predicated region
    $region10: #{tpu_custom_call.1} parent=1 // pred_check
      _
    $region11: #{tpu_custom_call.1} parent=1 // pred_check_branch
      %40 = sbr.rel (0) target = $region13
    $region12: #{tpu_custom_call.1} parent=1 // pred_region
      %s42 = ssub.s32 4096, 4096
      %43 = vsyncadd [#allocation6], %s42
      %s44 = sshll.u32 [#allocation7], 4
      %s45 = int_to_ptr.vmem [resolvable:$true] %s44
      %50 = dma.hbm_to_vmem [thread:$0]  %s2, 4096, %s45, [#allocation6], 256, 256, 16
    $region13: #{tpu_custom_call.1} parent=1 // pred_fallthru
      _
    // Predicated region
    $region14: #{tpu_custom_call.1} parent=1 // pred_check
      _
    $region15: #{tpu_custom_call.1} parent=1 // pred_check_branch
      %52 = sbr.rel (0) target = $region17
    $region16: #{tpu_custom_call.1} parent=1 // pred_region
      _
    $region17: #{tpu_custom_call.1} parent=1 // pred_fallthru
      _
    // Predicated region
    $region18: #{tpu_custom_call.1} parent=1 // pred_check
      _
    $region19: #{tpu_custom_call.1} parent=1 // pred_check_branch
      %54 = sbr.rel (0) target = $region21
    $region20: #{tpu_custom_call.1} parent=1 // pred_region
      %s56 = ssub.s32 4096, 4096
      %57 = vsyncadd [#allocation9], %s56
      %s58 = sshll.u32 [#allocation8], 4
      %s59 = int_to_ptr.vmem [resolvable:$true] %s58
      %64 = dma.hbm_to_vmem [thread:$0]  %s4, 4096, %s59, [#allocation9], 128, 128, 8
    $region21: #{tpu_custom_call.1} parent=1 // pred_fallthru
      _
    // Predicated region
    $region22: #{tpu_custom_call.1} parent=1 // pred_check
      _
    $region23: #{tpu_custom_call.1} parent=1 // pred_check_branch
      %66 = sbr.rel (0) target = $region25
    $region24: #{tpu_custom_call.1} parent=1 // pred_region
      _
    $region25: #{tpu_custom_call.1} parent=1 // pred_fallthru
      _
    // Predicated region
    $region26: #{tpu_custom_call.1} parent=1 // pred_check
      _
    $region27: #{tpu_custom_call.1} parent=1 // pred_check_branch
      %68 = sbr.rel (0) target = $region29
    $region28: #{tpu_custom_call.1} parent=1 // pred_region
      _
    $region29: #{tpu_custom_call.1} parent=1 // pred_fallthru
      _
    // Predicated region
    $region30: #{tpu_custom_call.1} parent=1 // pred_check
      _
    $region31: #{tpu_custom_call.1} parent=1 // pred_check_branch
      %70 = sbr.rel (0) target = $region33
    $region32: #{tpu_custom_call.1} parent=1 // pred_region
      _
    $region33: #{tpu_custom_call.1} parent=1 // pred_fallthru
      _
    // Predicated region
    $region34: #{tpu_custom_call.1} parent=1 // pred_check
      _
    $region35: #{tpu_custom_call.1} parent=1 // pred_check_branch
      %72 = sbr.rel (0) target = $region37
    $region36: #{tpu_custom_call.1} parent=1 // pred_region
      %73 = dma.done [#allocation3], 128
    $region37: #{tpu_custom_call.1} parent=1 // pred_fallthru
      _
    // Predicated region
    $region38: #{tpu_custom_call.1} parent=1 // pred_check
      _
    $region39: #{tpu_custom_call.1} parent=1 // pred_check_branch
      %75 = sbr.rel (0) target = $region41
    $region40: #{tpu_custom_call.1} parent=1 // pred_region
      %76 = dma.done [#allocation6], 2048
    $region41: #{tpu_custom_call.1} parent=1 // pred_fallthru
      _
    // Predicated region
    $region42: #{tpu_custom_call.1} parent=1 // pred_check
      _
    $region43: #{tpu_custom_call.1} parent=1 // pred_check_branch
      %78 = sbr.rel (0) target = $region45
    $region44: #{tpu_custom_call.1} parent=1 // pred_region
      %79 = dma.done [#allocation6], 4096
    $region45: #{tpu_custom_call.1} parent=1 // pred_fallthru
      _
    // Predicated region
    $region46: #{tpu_custom_call.1} parent=1 // pred_check
      _
    $region47: #{tpu_custom_call.1} parent=1 // pred_check_branch
      %81 = sbr.rel (0) target = $region49
    $region48: #{tpu_custom_call.1} parent=1 // pred_region
      %82 = dma.done [#allocation9], 4096
    $region49: #{tpu_custom_call.1} parent=1 // pred_fallthru
      _
    %v83 = vld [vmem:[#allocation2] sm:$0xff]
    %v84 = vld [vmem:[#allocation5] sm:$0xff]
    %v85 = vld [vmem:[#allocation5 + $0x8] sm:$0xff]
    %v86 = vld [vmem:[#allocation5 + $0x10] sm:$0xff]
    %v87 = vld [vmem:[#allocation5 + $0x18] sm:$0xff]
    %v88 = vld [vmem:[#allocation5 + $0x20] sm:$0xff]
    %v89 = vld [vmem:[#allocation5 + $0x28] sm:$0xff]
    %v90 = vld [vmem:[#allocation5 + $0x30] sm:$0xff]
    %v91 = vld [vmem:[#allocation5 + $0x38] sm:$0xff]
    %v92 = vld [vmem:[#allocation5 + $0x40] sm:$0xff]
    %v93 = vld [vmem:[#allocation5 + $0x48] sm:$0xff]
    %v94 = vld [vmem:[#allocation5 + $0x50] sm:$0xff]
    %v95 = vld [vmem:[#allocation5 + $0x58] sm:$0xff]
    %v96 = vld [vmem:[#allocation5 + $0x60] sm:$0xff]
    %v97 = vld [vmem:[#allocation5 + $0x68] sm:$0xff]
    %v98 = vld [vmem:[#allocation5 + $0x70] sm:$0xff]
    %v99 = vld [vmem:[#allocation5 + $0x78] sm:$0xff]
    %v100 = vld [vmem:[%s6] sm:$0x1]
    %v101 = vld [vmem:[%s7] sm:$0x1]
    %102 = vmatprep.subr.mxu0 0.0
    %103 = vmatpush1.msra.mxu0 %v84
    %104 = vmatprep.subr.mxu0 0.0
    %105 = vmatpush1.msra.mxu0 %v85
    %106 = vmatprep.subr.mxu0 0.0
    %107 = vmatpush1.msra.mxu0 %v86
    %108 = vmatprep.subr.mxu0 0.0
    %109 = vmatpush1.msra.mxu0 %v87
    %110 = vmatprep.subr.mxu0 0.0
    %111 = vmatpush1.msra.mxu0 %v88
    %112 = vmatprep.subr.mxu0 0.0
    %113 = vmatpush1.msra.mxu0 %v89
    %114 = vmatprep.subr.mxu0 0.0
    %115 = vmatpush1.msra.mxu0 %v90
    %116 = vmatprep.subr.mxu0 0.0
    %117 = vmatpush1.msra.mxu0 %v91
    %118 = vmatprep.subr.mxu0 0.0
    %119 = vmatpush1.msra.mxu0 %v92
    %120 = vmatprep.subr.mxu0 0.0
    %121 = vmatpush1.msra.mxu0 %v93
    %122 = vmatprep.subr.mxu0 0.0
    %123 = vmatpush1.msra.mxu0 %v94
    %124 = vmatprep.subr.mxu0 0.0
    %125 = vmatpush1.msra.mxu0 %v95
    %126 = vmatprep.subr.mxu0 0.0
    %127 = vmatpush1.msra.mxu0 %v96
    %128 = vmatprep.subr.mxu0 0.0
    %129 = vmatpush1.msra.mxu0 %v97
    %130 = vmatprep.subr.mxu0 0.0
    %131 = vmatpush1.msra.mxu0 %v98
    %132 = vmatprep.subr.mxu0 0.0
    %133 = vmatpush1.msra.mxu0 %v99
    %134 = vmatprep.subr.mxu0 0.0
    %135 = vmatpush1.msra.mxu0 0.0
    %136 = vmatprep.subr.mxu0 0.0
    %137 = vmatpush1.msra.mxu0 0.0
    %138 = vmatprep.subr.mxu0 0.0
    %139 = vmatpush1.msra.mxu0 0.0
    %140 = vmatprep.subr.mxu0 0.0
    %141 = vmatpush1.msra.mxu0 0.0
    %142 = vmatprep.subr.mxu0 0.0
    %143 = vmatpush1.msra.mxu0 0.0
    %144 = vmatprep.subr.mxu0 0.0
    %145 = vmatpush1.msra.mxu0 0.0
    %146 = vmatprep.subr.mxu0 0.0
    %147 = vmatpush1.msra.mxu0 0.0
    %148 = vmatprep.subr.mxu0 0.0
    %149 = vmatpush1.msra.mxu0 0.0
    %150 = vmatprep.subr.mxu0 0.0
    %151 = vmatpush1.msra.mxu0 0.0
    %152 = vmatprep.subr.mxu0 0.0
    %153 = vmatpush1.msra.mxu0 0.0
    %154 = vmatprep.subr.mxu0 0.0
    %155 = vmatpush1.msra.mxu0 0.0
    %156 = vmatprep.subr.mxu0 0.0
    %157 = vmatpush1.msra.mxu0 0.0
    %158 = vmatprep.subr.mxu0 0.0
    %159 = vmatpush1.msra.mxu0 0.0
    %160 = vmatprep.subr.mxu0 0.0
    %161 = vmatpush1.msra.mxu0 0.0
    %162 = vmatprep.subr.mxu0 0.0
    %163 = vmatpush1.msra.mxu0 0.0
    %164 = vmatprep.subr.mxu0 0.0
    %165 = vmatpush1.msra.mxu0 0.0
    %166 = vmatprep.mubr.f32.mxu0 0.0
    %167 = vmatmul.mubr.f32.gmra.mrb[0].mxu0 %v83
    %v168 = vpop.f32.mrb[0].mxu0
    %v169 = vadd.f32 0.0, %v168
    %v170 = vpop.f32.mrb[0].mxu0
    %171 = vdwg.mxu0
    %v172 = vmul.f32 %v169, 0.03125
    %v173 = vsub.f32 %v83, %v172
    %v174 = vmul.f32 %v173, %v173
    %175 = vmatprep.subr.mxu0 0.0
    %176 = vmatpush1.msra.mxu0 %v84
    %177 = vmatprep.subr.mxu0 0.0
    %178 = vmatpush1.msra.mxu0 %v85
    %179 = vmatprep.subr.mxu0 0.0
    %180 = vmatpush1.msra.mxu0 %v86
    %181 = vmatprep.subr.mxu0 0.0
    %182 = vmatpush1.msra.mxu0 %v87
    %183 = vmatprep.subr.mxu0 0.0
    %184 = vmatpush1.msra.mxu0 %v88
    %185 = vmatprep.subr.mxu0 0.0
    %186 = vmatpush1.msra.mxu0 %v89
    %187 = vmatprep.subr.mxu0 0.0
    %188 = vmatpush1.msra.mxu0 %v90
    %189 = vmatprep.subr.mxu0 0.0
    %190 = vmatpush1.msra.mxu0 %v91
    %191 = vmatprep.subr.mxu0 0.0
    %192 = vmatpush1.msra.mxu0 %v92
    %193 = vmatprep.subr.mxu0 0.0
    %194 = vmatpush1.msra.mxu0 %v93
    %195 = vmatprep.subr.mxu0 0.0
    %196 = vmatpush1.msra.mxu0 %v94
    %197 = vmatprep.subr.mxu0 0.0
    %198 = vmatpush1.msra.mxu0 %v95
    %199 = vmatprep.subr.mxu0 0.0
    %200 = vmatpush1.msra.mxu0 %v96
    %201 = vmatprep.subr.mxu0 0.0
    %202 = vmatpush1.msra.mxu0 %v97
    %203 = vmatprep.subr.mxu0 0.0
    %204 = vmatpush1.msra.mxu0 %v98
    %205 = vmatprep.subr.mxu0 0.0
    %206 = vmatpush1.msra.mxu0 %v99
    %207 = vmatprep.subr.mxu0 0.0
    %208 = vmatpush1.msra.mxu0 0.0
    %209 = vmatprep.subr.mxu0 0.0
    %210 = vmatpush1.msra.mxu0 0.0
    %211 = vmatprep.subr.mxu0 0.0
    %212 = vmatpush1.msra.mxu0 0.0
    %213 = vmatprep.subr.mxu0 0.0
    %214 = vmatpush1.msra.mxu0 0.0
    %215 = vmatprep.subr.mxu0 0.0
    %216 = vmatpush1.msra.mxu0 0.0
    %217 = vmatprep.subr.mxu0 0.0
    %218 = vmatpush1.msra.mxu0 0.0
    %219 = vmatprep.subr.mxu0 0.0
    %220 = vmatpush1.msra.mxu0 0.0
    %221 = vmatprep.subr.mxu0 0.0
    %222 = vmatpush1.msra.mxu0 0.0
    %223 = vmatprep.subr.mxu0 0.0
    %224 = vmatpush1.msra.mxu0 0.0
    %225 = vmatprep.subr.mxu0 0.0
    %226 = vmatpush1.msra.mxu0 0.0
    %227 = vmatprep.subr.mxu0 0.0
    %228 = vmatpush1.msra.mxu0 0.0
    %229 = vmatprep.subr.mxu0 0.0
    %230 = vmatpush1.msra.mxu0 0.0
    %231 = vmatprep.subr.mxu0 0.0
    %232 = vmatpush1.msra.mxu0 0.0
    %233 = vmatprep.subr.mxu0 0.0
    %234 = vmatpush1.msra.mxu0 0.0
    %235 = vmatprep.subr.mxu0 0.0
    %236 = vmatpush1.msra.mxu0 0.0
    %237 = vmatprep.subr.mxu0 0.0
    %238 = vmatpush1.msra.mxu0 0.0
    %239 = vmatprep.mubr.f32.mxu0 0.0
    %240 = vmatmul.mubr.f32.gmra.mrb[0].mxu0 %v174
    %v241 = vpop.f32.mrb[0].mxu0
    %v242 = vadd.f32 0.0, %v241
    %v243 = vpop.f32.mrb[0].mxu0
    %244 = vdwg.mxu0
    %v245 = vmul.f32 %v242, 0.03125
    %v246 = vadd.f32 %v245, 1e-05
    %v247 = vrsqrt.pop %v246
    %v248 = vmul.f32 %v173, %v247
    %v250 = vlaneseq
    %v251 = vshrl.u32 %v250, 7
    %v252 = vsub.s32 0, %v251
    %v253 = vrot.slane %v100, %v252
    %v255 = vmul.f32 %v248, %v253
    %v257 = vlaneseq
    %v258 = vshrl.u32 %v257, 7
    %v259 = vsub.s32 0, %v258
    %v260 = vrot.slane %v101, %v259
    %v262 = vadd.f32 %v255, %v260
    %v263 = vld [vmem:[#allocation7] sm:$0xff]
    %v264 = vld [vmem:[#allocation7 + $0x8] sm:$0xff]
    %v265 = vld [vmem:[#allocation7 + $0x10] sm:$0xff]
    %v266 = vld [vmem:[#allocation7 + $0x18] sm:$0xff]
    %v267 = vld [vmem:[#allocation7 + $0x20] sm:$0xff]
    %v268 = vld [vmem:[#allocation7 + $0x28] sm:$0xff]
    %v269 = vld [vmem:[#allocation7 + $0x30] sm:$0xff]
    %v270 = vld [vmem:[#allocation7 + $0x38] sm:$0xff]
    %v271 = vld [vmem:[#allocation7 + $0x40] sm:$0xff]
    %v272 = vld [vmem:[#allocation7 + $0x48] sm:$0xff]
    %v273 = vld [vmem:[#allocation7 + $0x50] sm:$0xff]
    %v274 = vld [vmem:[#allocation7 + $0x58] sm:$0xff]
    %v275 = vld [vmem:[#allocation7 + $0x60] sm:$0xff]
    %v276 = vld [vmem:[#allocation7 + $0x68] sm:$0xff]
    %v277 = vld [vmem:[#allocation7 + $0x70] sm:$0xff]
    %v278 = vld [vmem:[#allocation7 + $0x78] sm:$0xff]
    %v279 = vld [vmem:[#allocation7 + $0x80] sm:$0xff]
    %v280 = vld [vmem:[#allocation7 + $0x88] sm:$0xff]
    %v281 = vld [vmem:[#allocation7 + $0x90] sm:$0xff]
    %v282 = vld [vmem:[#allocation7 + $0x98] sm:$0xff]
    %v283 = vld [vmem:[#allocation7 + $0xa0] sm:$0xff]
    %v284 = vld [vmem:[#allocation7 + $0xa8] sm:$0xff]
    %v285 = vld [vmem:[#allocation7 + $0xb0] sm:$0xff]
    %v286 = vld [vmem:[#allocation7 + $0xb8] sm:$0xff]
    %v287 = vld [vmem:[#allocation7 + $0xc0] sm:$0xff]
    %v288 = vld [vmem:[#allocation7 + $0xc8] sm:$0xff]
    %v289 = vld [vmem:[#allocation7 + $0xd0] sm:$0xff]
    %v290 = vld [vmem:[#allocation7 + $0xd8] sm:$0xff]
    %v291 = vld [vmem:[#allocation7 + $0xe0] sm:$0xff]
    %v292 = vld [vmem:[#allocation7 + $0xe8] sm:$0xff]
    %v293 = vld [vmem:[#allocation7 + $0xf0] sm:$0xff]
    %v294 = vld [vmem:[#allocation7 + $0xf8] sm:$0xff]
    %v295 = vld [vmem:[%s3] sm:$0x3]
    %v297 = vlaneseq
    %v298 = vshrl.u32 %v297, 7
    %v299 = vsub.s32 0, %v298
    %v300 = vrot.slane %v295, %v299
    %v301 = vlaneseq
    %v302 = vshrl.u32 %v301, 7
    %v303 = vsub.s32 1, %v302
    %v304 = vrot.slane %v295, %v303
    %307 = vmatprep.subr.mxu0 %v264
    %308 = vmatpush1.msra.mxu0 %v263
    %309 = vmatprep.subr.mxu0 %v266
    %310 = vmatpush1.msra.mxu0 %v265
    %311 = vmatprep.subr.mxu0 %v268
    %312 = vmatpush1.msra.mxu0 %v267
    %313 = vmatprep.subr.mxu0 %v270
    %314 = vmatpush1.msra.mxu0 %v269
    %315 = vmatprep.subr.mxu0 %v272
    %316 = vmatpush1.msra.mxu0 %v271
    %317 = vmatprep.subr.mxu0 %v274
    %318 = vmatpush1.msra.mxu0 %v273
    %319 = vmatprep.subr.mxu0 %v276
    %320 = vmatpush1.msra.mxu0 %v275
    %321 = vmatprep.subr.mxu0 %v278
    %322 = vmatpush1.msra.mxu0 %v277
    %323 = vmatprep.subr.mxu0 %v280
    %324 = vmatpush1.msra.mxu0 %v279
    %325 = vmatprep.subr.mxu0 %v282
    %326 = vmatpush1.msra.mxu0 %v281
    %327 = vmatprep.subr.mxu0 %v284
    %328 = vmatpush1.msra.mxu0 %v283
    %329 = vmatprep.subr.mxu0 %v286
    %330 = vmatpush1.msra.mxu0 %v285
    %331 = vmatprep.subr.mxu0 %v288
    %332 = vmatpush1.msra.mxu0 %v287
    %333 = vmatprep.subr.mxu0 %v290
    %334 = vmatpush1.msra.mxu0 %v289
    %335 = vmatprep.subr.mxu0 %v292
    %336 = vmatpush1.msra.mxu0 %v291
    %337 = vmatprep.subr.mxu0 %v294
    %338 = vmatpush1.msra.mxu0 %v293
    %339 = vmatprep.subr.mxu0 0.0
    %340 = vmatpush1.msra.mxu0 0.0
    %341 = vmatprep.subr.mxu0 0.0
    %342 = vmatpush1.msra.mxu0 0.0
    %343 = vmatprep.subr.mxu0 0.0
    %344 = vmatpush1.msra.mxu0 0.0
    %345 = vmatprep.subr.mxu0 0.0
    %346 = vmatpush1.msra.mxu0 0.0
    %347 = vmatprep.subr.mxu0 0.0
    %348 = vmatpush1.msra.mxu0 0.0
    %349 = vmatprep.subr.mxu0 0.0
    %350 = vmatpush1.msra.mxu0 0.0
    %351 = vmatprep.subr.mxu0 0.0
    %352 = vmatpush1.msra.mxu0 0.0
    %353 = vmatprep.subr.mxu0 0.0
    %354 = vmatpush1.msra.mxu0 0.0
    %355 = vmatprep.subr.mxu0 0.0
    %356 = vmatpush1.msra.mxu0 0.0
    %357 = vmatprep.subr.mxu0 0.0
    %358 = vmatpush1.msra.mxu0 0.0
    %359 = vmatprep.subr.mxu0 0.0
    %360 = vmatpush1.msra.mxu0 0.0
    %361 = vmatprep.subr.mxu0 0.0
    %362 = vmatpush1.msra.mxu0 0.0
    %363 = vmatprep.subr.mxu0 0.0
    %364 = vmatpush1.msra.mxu0 0.0
    %365 = vmatprep.subr.mxu0 0.0
    %366 = vmatpush1.msra.mxu0 0.0
    %367 = vmatprep.subr.mxu0 0.0
    %368 = vmatpush1.msra.mxu0 0.0
    %369 = vmatprep.subr.mxu0 0.0
    %370 = vmatpush1.msra.mxu0 0.0
    %371 = vmatprep.mubr.f32.mxu0 0.0
    %372 = vmatmul.mubr.f32.gmra.mrb[0].mxu0 %v262
    %v373 = vpop.f32.mrb[0].mxu0
    %v374 = vadd.f32 %v300, %v373
    %v375 = vpop.f32.mrb[0].mxu0
    %v376 = vadd.f32 %v304, %v375
    %377 = vdwg.mxu0
    %v378 = vxor.u32 %v374, 2147483648
    %v379 = vxor.u32 %v376, 2147483648
    %v380 = vmul.f32 %v378, 1.442695
    %v381 = vpow.pop %v380
    %v382 = vmul.f32 %v379, 1.442695
    %v383 = vpow.pop %v382
    %v384 = vadd.f32 %v381, 1.0
    %v385 = vadd.f32 %v383, 1.0
    %v386 = vrcp.pop %v384
    %v387 = vmul.f32 1.0, %v386
    %v388 = vrcp.pop %v385
    %v389 = vmul.f32 1.0, %v388
    %v390 = vmul.f32 %v374, %v387
    %v391 = vmul.f32 %v376, %v389
    %v392 = vld [vmem:[#allocation8] sm:$0xff]
    %v393 = vld [vmem:[#allocation8 + $0x8] sm:$0xff]
    %v394 = vld [vmem:[#allocation8 + $0x10] sm:$0xff]
    %v395 = vld [vmem:[#allocation8 + $0x18] sm:$0xff]
    %v396 = vld [vmem:[#allocation8 + $0x20] sm:$0xff]
    %v397 = vld [vmem:[#allocation8 + $0x28] sm:$0xff]
    %v398 = vld [vmem:[#allocation8 + $0x30] sm:$0xff]
    %v399 = vld [vmem:[#allocation8 + $0x38] sm:$0xff]
    %v400 = vld [vmem:[#allocation8 + $0x40] sm:$0xff]
    %v401 = vld [vmem:[#allocation8 + $0x48] sm:$0xff]
    %v402 = vld [vmem:[#allocation8 + $0x50] sm:$0xff]
    %v403 = vld [vmem:[#allocation8 + $0x58] sm:$0xff]
    %v404 = vld [vmem:[#allocation8 + $0x60] sm:$0xff]
    %v405 = vld [vmem:[#allocation8 + $0x68] sm:$0xff]
    %v406 = vld [vmem:[#allocation8 + $0x70] sm:$0xff]
    %v407 = vld [vmem:[#allocation8 + $0x78] sm:$0xff]
    %v408 = vld [vmem:[#allocation8 + $0x80] sm:$0xff]
    %v409 = vld [vmem:[#allocation8 + $0x88] sm:$0xff]
    %v410 = vld [vmem:[#allocation8 + $0x90] sm:$0xff]
    %v411 = vld [vmem:[#allocation8 + $0x98] sm:$0xff]
    %v412 = vld [vmem:[#allocation8 + $0xa0] sm:$0xff]
    %v413 = vld [vmem:[#allocation8 + $0xa8] sm:$0xff]
    %v414 = vld [vmem:[#allocation8 + $0xb0] sm:$0xff]
    %v415 = vld [vmem:[#allocation8 + $0xb8] sm:$0xff]
    %v416 = vld [vmem:[#allocation8 + $0xc0] sm:$0xff]
    %v417 = vld [vmem:[#allocation8 + $0xc8] sm:$0xff]
    %v418 = vld [vmem:[#allocation8 + $0xd0] sm:$0xff]
    %v419 = vld [vmem:[#allocation8 + $0xd8] sm:$0xff]
    %v420 = vld [vmem:[#allocation8 + $0xe0] sm:$0xff]
    %v421 = vld [vmem:[#allocation8 + $0xe8] sm:$0xff]
    %v422 = vld [vmem:[#allocation8 + $0xf0] sm:$0xff]
    %v423 = vld [vmem:[#allocation8 + $0xf8] sm:$0xff]
    %v424 = vld [vmem:[%s5] sm:$0x1]
    %v426 = vlaneseq
    %v427 = vshrl.u32 %v426, 7
    %v428 = vsub.s32 0, %v427
    %v429 = vrot.slane %v424, %v428
    %431 = vmatprep.subr.mxu0 0.0
    %432 = vmatpush1.msra.mxu0 %v392
    %433 = vmatprep.subr.mxu0 0.0
    %434 = vmatpush1.msra.mxu0 %v393
    %435 = vmatprep.subr.mxu0 0.0
    %436 = vmatpush1.msra.mxu0 %v394
    %437 = vmatprep.subr.mxu0 0.0
    %438 = vmatpush1.msra.mxu0 %v395
    %439 = vmatprep.subr.mxu0 0.0
    %440 = vmatpush1.msra.mxu0 %v396
    %441 = vmatprep.subr.mxu0 0.0
    %442 = vmatpush1.msra.mxu0 %v397
    %443 = vmatprep.subr.mxu0 0.0
    %444 = vmatpush1.msra.mxu0 %v398
    %445 = vmatprep.subr.mxu0 0.0
    %446 = vmatpush1.msra.mxu0 %v399
    %447 = vmatprep.subr.mxu0 0.0
    %448 = vmatpush1.msra.mxu0 %v400
    %449 = vmatprep.subr.mxu0 0.0
    %450 = vmatpush1.msra.mxu0 %v401
    %451 = vmatprep.subr.mxu0 0.0
    %452 = vmatpush1.msra.mxu0 %v402
    %453 = vmatprep.subr.mxu0 0.0
    %454 = vmatpush1.msra.mxu0 %v403
    %455 = vmatprep.subr.mxu0 0.0
    %456 = vmatpush1.msra.mxu0 %v404
    %457 = vmatprep.subr.mxu0 0.0
    %458 = vmatpush1.msra.mxu0 %v405
    %459 = vmatprep.subr.mxu0 0.0
    %460 = vmatpush1.msra.mxu0 %v406
    %461 = vmatprep.subr.mxu0 0.0
    %462 = vmatpush1.msra.mxu0 %v407
    %463 = vmatprep.subr.mxu0 0.0
    %464 = vmatpush1.msra.mxu0 %v408
    %465 = vmatprep.subr.mxu0 0.0
    %466 = vmatpush1.msra.mxu0 %v409
    %467 = vmatprep.subr.mxu0 0.0
    %468 = vmatpush1.msra.mxu0 %v410
    %469 = vmatprep.subr.mxu0 0.0
    %470 = vmatpush1.msra.mxu0 %v411
    %471 = vmatprep.subr.mxu0 0.0
    %472 = vmatpush1.msra.mxu0 %v412
    %473 = vmatprep.subr.mxu0 0.0
    %474 = vmatpush1.msra.mxu0 %v413
    %475 = vmatprep.subr.mxu0 0.0
    %476 = vmatpush1.msra.mxu0 %v414
    %477 = vmatprep.subr.mxu0 0.0
    %478 = vmatpush1.msra.mxu0 %v415
    %479 = vmatprep.subr.mxu0 0.0
    %480 = vmatpush1.msra.mxu0 %v416
    %481 = vmatprep.subr.mxu0 0.0
    %482 = vmatpush1.msra.mxu0 %v417
    %483 = vmatprep.subr.mxu0 0.0
    %484 = vmatpush1.msra.mxu0 %v418
    %485 = vmatprep.subr.mxu0 0.0
    %486 = vmatpush1.msra.mxu0 %v419
    %487 = vmatprep.subr.mxu0 0.0
    %488 = vmatpush1.msra.mxu0 %v420
    %489 = vmatprep.subr.mxu0 0.0
    %490 = vmatpush1.msra.mxu0 %v421
    %491 = vmatprep.subr.mxu0 0.0
    %492 = vmatpush1.msra.mxu0 %v422
    %493 = vmatprep.subr.mxu0 0.0
    %494 = vmatpush1.msra.mxu0 %v423
    %495 = vmatprep.mubr.f32.mxu0 %v391
    %496 = vmatmul.mubr.f32.gmra.mrb[0].mxu0 %v390
    %v497 = vpop.f32.mrb[0].mxu0
    %v498 = vadd.f32 %v429, %v497
    %v499 = vpop.f32.mrb[0].mxu0
    %500 = vdwg.mxu0
    %v501 = vadd.f32 %v498, %v262
    %502 = vst [vmem:[#allocation10] sm:$0xff] %v501
    // Predicated region
    $region50: #{tpu_custom_call.1} parent=1 // pred_check
      _
    $region51: #{tpu_custom_call.1} parent=1 // pred_check_branch
      %504 = sbr.rel (0) target = $region53
    $region52: #{tpu_custom_call.1} parent=1 // pred_region
      %s506 = ssub.s32 128, 128
      %507 = vsyncadd [#allocation4], %s506
      %s509 = sshll.u32 [#allocation10], 4
      %s510 = int_to_ptr.vmem [resolvable:$true] %s509
      %512 = dma.vmem_to_hbm [thread:$0]  %s510, 128, %s8, [#allocation4]
    $region53: #{tpu_custom_call.1} parent=1 // pred_fallthru
      _
    // Predicated region
    $region54: #{tpu_custom_call.1} parent=1 // pred_check
      _
    $region55: #{tpu_custom_call.1} parent=1 // pred_check_branch
      %514 = sbr.rel (0) target = $region57
    $region56: #{tpu_custom_call.1} parent=1 // pred_region
      %515 = dma.done [#allocation4], 128
    $region57: #{tpu_custom_call.1} parent=1 // pred_fallthru
      _
    %516 = vsyncpa [#allocation3], 1
    %517 = vsyncpa [#allocation6], 1
    %518 = vsyncpa [#allocation9], 1
    %519 = vsyncpa [#allocation4], 1

</llo_original>
